<compile_context>
chip_gen: v5e
topology: v5e:2x2
jax: 0.10.0
libtpu: 0.0.40
codegen_flags: <defaults>
</compile_context>

<pallas_src>
import functools

import numpy as np

import jax
import jax.numpy as jnp
from jax.experimental import pallas as pl
from jax.experimental.pallas import tpu as pltpu  # noqa: F401  (TPU-specific tuning hooks)

LANES = 128


def gru_kernel(x_aug_ref,     # (T, D+1)    [X^T | ones]  (timestep-major)
               wi_aug_ref,    # (D+1, 3H)   [Wi_fused ; (bi + [bh_r|bh_i|0])]
               wh_ref,        # (H, 3H)     fused recurrent weights, gate order [r|i|n]
               wo_ref,        # (H, D)      h2o weights
               small_ref,     # (3, H)      row0 = bh_n, row1 = h0, row2 = [bo | 0-pad]
               out_ref,       # (T_pad, LANES) lanes [0:H]=log_h, [H:H+D]=log_yhat, rest 0
               *, H, D, T, T_pad):
    # ---- Batched input projection (all T rows; last row unused) — one MXU matmul,
    # bias (and the unconditionally-added bh_r / bh_i) baked in via the ones column.
    gx = jnp.dot(x_aug_ref[...], wi_aug_ref[...],
                 preferred_element_type=jnp.float32)                   # (T, 3H)

    # ---- Hoist recurrent weights / residual bias / h0 into vregs (read once) ----
    wh = wh_ref[...]                                                   # (H, 3H)
    bh_n = small_ref[0:1, :]                                           # (1, H)
    h = small_ref[1:2, :]                                              # (1, H), lives in vregs

    # ---- Serial recurrence: ONE h2h matmul + fused-gate math per step -----------
    hs = []
    for t in range(T - 1):                                             # static, fully unrolled
        gh = jnp.dot(h, wh, preferred_element_type=jnp.float32)        # (1, 3H), single MXU push
        # One sigmoid over the lane-concatenated [r|i] block (one EUP push).
        ri = jax.nn.sigmoid(gx[t:t + 1, 0:2 * H] + gh[:, 0:2 * H])     # (1, 2H)
        r = ri[:, 0:H]
        z = ri[:, H:2 * H]
        n = jnp.tanh(gx[t:t + 1, 2 * H:3 * H] + r * (gh[:, 2 * H:3 * H] + bh_n))
        h = n + z * (h - n)
        hs.append(h)                                                   # stays in vregs

    # ---- Batched output projection + single lane-dense store --------------------
    h_all = jnp.concatenate(hs, axis=0)                                # (T-1, H)
    bo = small_ref[2:3, 0:D]                                           # (1, D)
    yhat = jnp.dot(h_all, wo_ref[...],
                   preferred_element_type=jnp.float32) + bo            # (T-1, D)

    packed = jnp.concatenate(
        [h_all, yhat, jnp.zeros((T - 1, LANES - (H + D)), jnp.float32)],
        axis=-1)                                                       # (T-1, LANES)
    if T_pad > T - 1:
        packed = jnp.concatenate(
            [packed, jnp.zeros((T_pad - (T - 1), LANES), jnp.float32)], axis=0)
    out_ref[...] = packed                                              # one unmasked dense store


def _gru_forward_impl(X, Wi_t, bi, Wh_t, bh, Wo_t, bo, h0):
    """X: (dim_input, T) float32. Weights already transposed to [in, out]."""
    D, T = X.shape
    H = Wh_t.shape[0]
    assert T >= 2, "need at least two timesteps"
    assert H + D <= LANES

    T_pad = max(8, ((T - 1 + 7) // 8) * 8)

    x_td = jnp.asarray(X, jnp.float32).T                               # (T, D)
    x_aug = jnp.concatenate([x_td, jnp.ones((T, 1), jnp.float32)], axis=-1)  # (T, D+1)

    # Fold bh_r and bh_i (added unconditionally) into the i2h bias; keep bh_n out —
    # it sits inside resetgate * (h @ Wh_n + bh_n).
    bias_fused = bi + jnp.concatenate(
        [bh[:, 0:H], bh[:, H:2 * H], jnp.zeros((1, H), jnp.float32)], axis=-1)  # (1, 3H)
    wi_aug = jnp.concatenate([Wi_t, bias_fused], axis=0)               # (D+1, 3H)

    bh_n = bh[:, 2 * H:3 * H]                                          # (1, H)
    bo_pad = jnp.concatenate([bo, jnp.zeros((1, H - D), jnp.float32)], axis=-1) \
        if H > D else bo[:, 0:H]
    small = jnp.concatenate([bh_n, h0.reshape(1, H), bo_pad], axis=0)  # (3, H)

    kernel = functools.partial(gru_kernel, H=H, D=D, T=T, T_pad=T_pad)
    out = pl.pallas_call(
        kernel,
        out_shape=jax.ShapeDtypeStruct((T_pad, LANES), jnp.float32),
    )(x_aug, wi_aug, Wh_t, Wo_t, small)

    log_h = out[:T - 1, 0:H]                                           # (T-1, H)
    log_yhat = out[:T - 1, H:H + D]                                    # (T-1, D)

    # Glue (O(T*D) elementwise), fused into the same jit: per-step MSE, summed
    # loss (reference does `loss += loss_it`), Pearson-correlation "accuracy".
    y_seq = x_td[1:, :]                                                # (T-1, D) targets
    diff = y_seq - log_yhat
    log_loss = jnp.mean(diff * diff, axis=-1)                          # (T-1,)
    loss = jnp.sum(log_loss)                                           # scalar

    def corr(a, b):
        a_c = a - jnp.mean(a)
        b_c = b - jnp.mean(b)
        return jnp.sum(a_c * b_c) / jnp.sqrt(jnp.sum(a_c * a_c) * jnp.sum(b_c * b_c))

    log_acc = jax.vmap(corr)(log_yhat, y_seq)                          # (T-1,)

    return loss, log_loss, log_acc, log_h, log_yhat


gru_forward = jax.jit(_gru_forward_impl)


def gru_reference(X, Wi_pt, bi, Wh_pt, bh, Wo_pt, bo, h0):
    """Pure-JAX step-by-step reference mirroring the PyTorch forward."""
    D, T = X.shape
    H = h0.shape[0]
    h = h0
    log_h, log_yhat = [], []
    for t in range(T - 1):
        x_t = X[:, t]
        gate_x = Wi_pt @ x_t + bi[0]
        gate_h = Wh_pt @ h + bh[0]
        i_r, i_i, i_n = gate_x[:H], gate_x[H:2 * H], gate_x[2 * H:]
        h_r, h_i, h_n = gate_h[:H], gate_h[H:2 * H], gate_h[2 * H:]
        r = jax.nn.sigmoid(i_r + h_r)
        z = jax.nn.sigmoid(i_i + h_i)
        n = jnp.tanh(i_n + r * h_n)
        h = n + z * (h - n)
        log_h.append(h)
        log_yhat.append(Wo_pt @ h + bo[0])
    return jnp.stack(log_h), jnp.stack(log_yhat)


def orthogonal_init(key, rows, cols):
    """Deterministic orthogonal init (QR), matching nn.init.orthogonal_ semantics."""
    big, small = max(rows, cols), min(rows, cols)
    a = jax.random.normal(key, (big, small), dtype=jnp.float32)
    q, r = jnp.linalg.qr(a)
    q = q * jnp.sign(jnp.diag(r))
    if rows < cols:
        q = q.T
    return q[:rows, :cols]


if __name__ == "__main__":
    dim_input = 4           # dim_output = dim_input
    T = 8                   # sequence length (X has T columns)
    H = dim_input * 2       # dim_hidden

    key = jax.random.PRNGKey(0)
    k_wi, k_wh, k_wo, k_h0, k_x = jax.random.split(key, 5)

    # PyTorch Linear stores weight as (out, in); kernel wants (in, out) -> transpose.
    Wi_pt = orthogonal_init(k_wi, 3 * H, dim_input)           # i2h.weight
    Wh_pt = orthogonal_init(k_wh, 3 * H, H)                   # h2h.weight
    Wo_pt = orthogonal_init(k_wo, dim_input, H)               # h2o.weight
    bi = jnp.full((1, 3 * H), 0.1, jnp.float32)               # i2h.bias = 0.1
    bh = jnp.full((1, 3 * H), 0.1, jnp.float32)               # h2h.bias = 0.1
    bo = jnp.full((1, dim_input), 0.1, jnp.float32)           # h2o.bias = 0.1

    h0 = jax.random.normal(k_h0, (H,), dtype=jnp.float32) * 0.1   # get_rand_states()
    X = jax.random.normal(k_x, (dim_input, T), dtype=jnp.float32)

    loss, log_loss, log_acc, log_h, log_yhat = gru_forward(
        X, Wi_pt.T, bi, Wh_pt.T, bh, Wo_pt.T, bo, h0)
    jax.block_until_ready((loss, log_loss, log_acc, log_h, log_yhat))

    assert loss.shape == ()
    assert log_loss.shape == (T - 1,)
    assert log_acc.shape == (T - 1,)
    assert log_h.shape == (T - 1, H)
    assert log_yhat.shape == (T - 1, dim_input)

    # Correctness check against the pure-JAX step-by-step reference.
    ref_h, ref_yhat = gru_reference(X, Wi_pt, bi, Wh_pt, bh, Wo_pt, bo, h0)
    np.testing.assert_allclose(np.asarray(log_h), np.asarray(ref_h),
                               rtol=1e-3, atol=1e-4)
    np.testing.assert_allclose(np.asarray(log_yhat), np.asarray(ref_yhat),
                               rtol=1e-3, atol=1e-4)

    print("KERNEL_OK")
</pallas_src>

<mosaic_0001>
module attributes {stable_mosaic.version = 11 : i64} {
  func.func @gru_kernel(%arg0: memref<8x5xf32, #tpu.memory_space<vmem>>, %arg1: memref<5x24xf32, #tpu.memory_space<vmem>>, %arg2: memref<8x24xf32, #tpu.memory_space<vmem>>, %arg3: memref<8x4xf32, #tpu.memory_space<vmem>>, %arg4: memref<3x8xf32, #tpu.memory_space<vmem>>, %arg5: memref<8x128xf32, #tpu.memory_space<vmem>>) attributes {dimension_semantics = [], scalar_prefetch = 0 : i64, scratch_operands = 0 : i64, tpu.core_type = #tpu.core_type<tc>} {
    %c0 = arith.constant 0 : index
    %c0_0 = arith.constant 0 : index
    %0 = vector.load %arg0[%c0, %c0_0] : memref<8x5xf32, #tpu.memory_space<vmem>>, vector<8x5xf32>
    %c0_1 = arith.constant 0 : index
    %c0_2 = arith.constant 0 : index
    %1 = vector.load %arg1[%c0_1, %c0_2] : memref<5x24xf32, #tpu.memory_space<vmem>>, vector<5x24xf32>
    %cst = arith.constant dense<0.000000e+00> : vector<8x24xf32>
    %2 = tpu.matmul %0, %1, %cst {dimension_numbers = #tpu.dot_dimension_numbers<[1], [0], [0], [1], [0, 0, 1, 1], [], []>} : vector<8x5xf32>, vector<5x24xf32>, vector<8x24xf32> -> vector<8x24xf32>
    %c0_3 = arith.constant 0 : index
    %c0_4 = arith.constant 0 : index
    %3 = vector.load %arg2[%c0_3, %c0_4] : memref<8x24xf32, #tpu.memory_space<vmem>>, vector<8x24xf32>
    %c0_5 = arith.constant 0 : index
    %c0_6 = arith.constant 0 : index
    %4 = vector.load %arg4[%c0_5, %c0_6] : memref<3x8xf32, #tpu.memory_space<vmem>>, vector<1x8xf32>
    %c1 = arith.constant 1 : index
    %c0_7 = arith.constant 0 : index
    %5 = vector.load %arg4[%c1, %c0_7] : memref<3x8xf32, #tpu.memory_space<vmem>>, vector<1x8xf32>
    %cst_8 = arith.constant dense<0.000000e+00> : vector<1x24xf32>
    %6 = tpu.matmul %5, %3, %cst_8 {dimension_numbers = #tpu.dot_dimension_numbers<[1], [0], [0], [1], [0, 0, 1, 1], [], []>} : vector<1x8xf32>, vector<8x24xf32>, vector<1x24xf32> -> vector<1x24xf32>
    %7 = vector.extract_strided_slice %2 {offsets = [0, 0], sizes = [1, 16], strides = [1, 1]} : vector<8x24xf32> to vector<1x16xf32>
    %8 = vector.extract_strided_slice %6 {offsets = [0, 0], sizes = [1, 16], strides = [1, 1]} : vector<1x24xf32> to vector<1x16xf32>
    %9 = arith.addf %7, %8 : vector<1x16xf32>
    %10 = arith.negf %9 : vector<1x16xf32>
    %11 = math.exp %10 : vector<1x16xf32>
    %cst_9 = arith.constant 1.000000e+00 : f32
    %12 = vector.broadcast %cst_9 : f32 to vector<1x16xf32>
    %13 = arith.addf %12, %11 : vector<1x16xf32>
    %14 = arith.divf %12, %13 : vector<1x16xf32>
    %15 = vector.extract_strided_slice %14 {offsets = [0, 0], sizes = [1, 8], strides = [1, 1]} : vector<1x16xf32> to vector<1x8xf32>
    %16 = vector.extract_strided_slice %14 {offsets = [0, 8], sizes = [1, 8], strides = [1, 1]} : vector<1x16xf32> to vector<1x8xf32>
    %17 = vector.extract_strided_slice %2 {offsets = [0, 16], sizes = [1, 8], strides = [1, 1]} : vector<8x24xf32> to vector<1x8xf32>
    %18 = vector.extract_strided_slice %6 {offsets = [0, 16], sizes = [1, 8], strides = [1, 1]} : vector<1x24xf32> to vector<1x8xf32>
    %19 = arith.addf %18, %4 : vector<1x8xf32>
    %20 = arith.mulf %15, %19 : vector<1x8xf32>
    %21 = arith.addf %17, %20 : vector<1x8xf32>
    %22 = math.tanh %21 : vector<1x8xf32>
    %23 = arith.subf %5, %22 : vector<1x8xf32>
    %24 = arith.mulf %16, %23 : vector<1x8xf32>
    %25 = arith.addf %22, %24 : vector<1x8xf32>
    %cst_10 = arith.constant dense<0.000000e+00> : vector<1x24xf32>
    %26 = tpu.matmul %25, %3, %cst_10 {dimension_numbers = #tpu.dot_dimension_numbers<[1], [0], [0], [1], [0, 0, 1, 1], [], []>} : vector<1x8xf32>, vector<8x24xf32>, vector<1x24xf32> -> vector<1x24xf32>
    %27 = vector.extract_strided_slice %2 {offsets = [1, 0], sizes = [1, 16], strides = [1, 1]} : vector<8x24xf32> to vector<1x16xf32>
    %28 = vector.extract_strided_slice %26 {offsets = [0, 0], sizes = [1, 16], strides = [1, 1]} : vector<1x24xf32> to vector<1x16xf32>
    %29 = arith.addf %27, %28 : vector<1x16xf32>
    %30 = arith.negf %29 : vector<1x16xf32>
    %31 = math.exp %30 : vector<1x16xf32>
    %cst_11 = arith.constant 1.000000e+00 : f32
    %32 = vector.broadcast %cst_11 : f32 to vector<1x16xf32>
    %33 = arith.addf %32, %31 : vector<1x16xf32>
    %34 = arith.divf %32, %33 : vector<1x16xf32>
    %35 = vector.extract_strided_slice %34 {offsets = [0, 0], sizes = [1, 8], strides = [1, 1]} : vector<1x16xf32> to vector<1x8xf32>
    %36 = vector.extract_strided_slice %34 {offsets = [0, 8], sizes = [1, 8], strides = [1, 1]} : vector<1x16xf32> to vector<1x8xf32>
    %37 = vector.extract_strided_slice %2 {offsets = [1, 16], sizes = [1, 8], strides = [1, 1]} : vector<8x24xf32> to vector<1x8xf32>
    %38 = vector.extract_strided_slice %26 {offsets = [0, 16], sizes = [1, 8], strides = [1, 1]} : vector<1x24xf32> to vector<1x8xf32>
    %39 = arith.addf %38, %4 : vector<1x8xf32>
    %40 = arith.mulf %35, %39 : vector<1x8xf32>
    %41 = arith.addf %37, %40 : vector<1x8xf32>
    %42 = math.tanh %41 : vector<1x8xf32>
    %43 = arith.subf %25, %42 : vector<1x8xf32>
    %44 = arith.mulf %36, %43 : vector<1x8xf32>
    %45 = arith.addf %42, %44 : vector<1x8xf32>
    %cst_12 = arith.constant dense<0.000000e+00> : vector<1x24xf32>
    %46 = tpu.matmul %45, %3, %cst_12 {dimension_numbers = #tpu.dot_dimension_numbers<[1], [0], [0], [1], [0, 0, 1, 1], [], []>} : vector<1x8xf32>, vector<8x24xf32>, vector<1x24xf32> -> vector<1x24xf32>
    %47 = vector.extract_strided_slice %2 {offsets = [2, 0], sizes = [1, 16], strides = [1, 1]} : vector<8x24xf32> to vector<1x16xf32>
    %48 = vector.extract_strided_slice %46 {offsets = [0, 0], sizes = [1, 16], strides = [1, 1]} : vector<1x24xf32> to vector<1x16xf32>
    %49 = arith.addf %47, %48 : vector<1x16xf32>
    %50 = arith.negf %49 : vector<1x16xf32>
    %51 = math.exp %50 : vector<1x16xf32>
    %cst_13 = arith.constant 1.000000e+00 : f32
    %52 = vector.broadcast %cst_13 : f32 to vector<1x16xf32>
    %53 = arith.addf %52, %51 : vector<1x16xf32>
    %54 = arith.divf %52, %53 : vector<1x16xf32>
    %55 = vector.extract_strided_slice %54 {offsets = [0, 0], sizes = [1, 8], strides = [1, 1]} : vector<1x16xf32> to vector<1x8xf32>
    %56 = vector.extract_strided_slice %54 {offsets = [0, 8], sizes = [1, 8], strides = [1, 1]} : vector<1x16xf32> to vector<1x8xf32>
    %57 = vector.extract_strided_slice %2 {offsets = [2, 16], sizes = [1, 8], strides = [1, 1]} : vector<8x24xf32> to vector<1x8xf32>
    %58 = vector.extract_strided_slice %46 {offsets = [0, 16], sizes = [1, 8], strides = [1, 1]} : vector<1x24xf32> to vector<1x8xf32>
    %59 = arith.addf %58, %4 : vector<1x8xf32>
    %60 = arith.mulf %55, %59 : vector<1x8xf32>
    %61 = arith.addf %57, %60 : vector<1x8xf32>
    %62 = math.tanh %61 : vector<1x8xf32>
    %63 = arith.subf %45, %62 : vector<1x8xf32>
    %64 = arith.mulf %56, %63 : vector<1x8xf32>
    %65 = arith.addf %62, %64 : vector<1x8xf32>
    %cst_14 = arith.constant dense<0.000000e+00> : vector<1x24xf32>
    %66 = tpu.matmul %65, %3, %cst_14 {dimension_numbers = #tpu.dot_dimension_numbers<[1], [0], [0], [1], [0, 0, 1, 1], [], []>} : vector<1x8xf32>, vector<8x24xf32>, vector<1x24xf32> -> vector<1x24xf32>
    %67 = vector.extract_strided_slice %2 {offsets = [3, 0], sizes = [1, 16], strides = [1, 1]} : vector<8x24xf32> to vector<1x16xf32>
    %68 = vector.extract_strided_slice %66 {offsets = [0, 0], sizes = [1, 16], strides = [1, 1]} : vector<1x24xf32> to vector<1x16xf32>
    %69 = arith.addf %67, %68 : vector<1x16xf32>
    %70 = arith.negf %69 : vector<1x16xf32>
    %71 = math.exp %70 : vector<1x16xf32>
    %cst_15 = arith.constant 1.000000e+00 : f32
    %72 = vector.broadcast %cst_15 : f32 to vector<1x16xf32>
    %73 = arith.addf %72, %71 : vector<1x16xf32>
    %74 = arith.divf %72, %73 : vector<1x16xf32>
    %75 = vector.extract_strided_slice %74 {offsets = [0, 0], sizes = [1, 8], strides = [1, 1]} : vector<1x16xf32> to vector<1x8xf32>
    %76 = vector.extract_strided_slice %74 {offsets = [0, 8], sizes = [1, 8], strides = [1, 1]} : vector<1x16xf32> to vector<1x8xf32>
    %77 = vector.extract_strided_slice %2 {offsets = [3, 16], sizes = [1, 8], strides = [1, 1]} : vector<8x24xf32> to vector<1x8xf32>
    %78 = vector.extract_strided_slice %66 {offsets = [0, 16], sizes = [1, 8], strides = [1, 1]} : vector<1x24xf32> to vector<1x8xf32>
    %79 = arith.addf %78, %4 : vector<1x8xf32>
    %80 = arith.mulf %75, %79 : vector<1x8xf32>
    %81 = arith.addf %77, %80 : vector<1x8xf32>
    %82 = math.tanh %81 : vector<1x8xf32>
    %83 = arith.subf %65, %82 : vector<1x8xf32>
    %84 = arith.mulf %76, %83 : vector<1x8xf32>
    %85 = arith.addf %82, %84 : vector<1x8xf32>
    %cst_16 = arith.constant dense<0.000000e+00> : vector<1x24xf32>
    %86 = tpu.matmul %85, %3, %cst_16 {dimension_numbers = #tpu.dot_dimension_numbers<[1], [0], [0], [1], [0, 0, 1, 1], [], []>} : vector<1x8xf32>, vector<8x24xf32>, vector<1x24xf32> -> vector<1x24xf32>
    %87 = vector.extract_strided_slice %2 {offsets = [4, 0], sizes = [1, 16], strides = [1, 1]} : vector<8x24xf32> to vector<1x16xf32>
    %88 = vector.extract_strided_slice %86 {offsets = [0, 0], sizes = [1, 16], strides = [1, 1]} : vector<1x24xf32> to vector<1x16xf32>
    %89 = arith.addf %87, %88 : vector<1x16xf32>
    %90 = arith.negf %89 : vector<1x16xf32>
    %91 = math.exp %90 : vector<1x16xf32>
    %cst_17 = arith.constant 1.000000e+00 : f32
    %92 = vector.broadcast %cst_17 : f32 to vector<1x16xf32>
    %93 = arith.addf %92, %91 : vector<1x16xf32>
    %94 = arith.divf %92, %93 : vector<1x16xf32>
    %95 = vector.extract_strided_slice %94 {offsets = [0, 0], sizes = [1, 8], strides = [1, 1]} : vector<1x16xf32> to vector<1x8xf32>
    %96 = vector.extract_strided_slice %94 {offsets = [0, 8], sizes = [1, 8], strides = [1, 1]} : vector<1x16xf32> to vector<1x8xf32>
    %97 = vector.extract_strided_slice %2 {offsets = [4, 16], sizes = [1, 8], strides = [1, 1]} : vector<8x24xf32> to vector<1x8xf32>
    %98 = vector.extract_strided_slice %86 {offsets = [0, 16], sizes = [1, 8], strides = [1, 1]} : vector<1x24xf32> to vector<1x8xf32>
    %99 = arith.addf %98, %4 : vector<1x8xf32>
    %100 = arith.mulf %95, %99 : vector<1x8xf32>
    %101 = arith.addf %97, %100 : vector<1x8xf32>
    %102 = math.tanh %101 : vector<1x8xf32>
    %103 = arith.subf %85, %102 : vector<1x8xf32>
    %104 = arith.mulf %96, %103 : vector<1x8xf32>
    %105 = arith.addf %102, %104 : vector<1x8xf32>
    %cst_18 = arith.constant dense<0.000000e+00> : vector<1x24xf32>
    %106 = tpu.matmul %105, %3, %cst_18 {dimension_numbers = #tpu.dot_dimension_numbers<[1], [0], [0], [1], [0, 0, 1, 1], [], []>} : vector<1x8xf32>, vector<8x24xf32>, vector<1x24xf32> -> vector<1x24xf32>
    %107 = vector.extract_strided_slice %2 {offsets = [5, 0], sizes = [1, 16], strides = [1, 1]} : vector<8x24xf32> to vector<1x16xf32>
    %108 = vector.extract_strided_slice %106 {offsets = [0, 0], sizes = [1, 16], strides = [1, 1]} : vector<1x24xf32> to vector<1x16xf32>
    %109 = arith.addf %107, %108 : vector<1x16xf32>
    %110 = arith.negf %109 : vector<1x16xf32>
    %111 = math.exp %110 : vector<1x16xf32>
    %cst_19 = arith.constant 1.000000e+00 : f32
    %112 = vector.broadcast %cst_19 : f32 to vector<1x16xf32>
    %113 = arith.addf %112, %111 : vector<1x16xf32>
    %114 = arith.divf %112, %113 : vector<1x16xf32>
    %115 = vector.extract_strided_slice %114 {offsets = [0, 0], sizes = [1, 8], strides = [1, 1]} : vector<1x16xf32> to vector<1x8xf32>
    %116 = vector.extract_strided_slice %114 {offsets = [0, 8], sizes = [1, 8], strides = [1, 1]} : vector<1x16xf32> to vector<1x8xf32>
    %117 = vector.extract_strided_slice %2 {offsets = [5, 16], sizes = [1, 8], strides = [1, 1]} : vector<8x24xf32> to vector<1x8xf32>
    %118 = vector.extract_strided_slice %106 {offsets = [0, 16], sizes = [1, 8], strides = [1, 1]} : vector<1x24xf32> to vector<1x8xf32>
    %119 = arith.addf %118, %4 : vector<1x8xf32>
    %120 = arith.mulf %115, %119 : vector<1x8xf32>
    %121 = arith.addf %117, %120 : vector<1x8xf32>
    %122 = math.tanh %121 : vector<1x8xf32>
    %123 = arith.subf %105, %122 : vector<1x8xf32>
    %124 = arith.mulf %116, %123 : vector<1x8xf32>
    %125 = arith.addf %122, %124 : vector<1x8xf32>
    %cst_20 = arith.constant dense<0.000000e+00> : vector<1x24xf32>
    %126 = tpu.matmul %125, %3, %cst_20 {dimension_numbers = #tpu.dot_dimension_numbers<[1], [0], [0], [1], [0, 0, 1, 1], [], []>} : vector<1x8xf32>, vector<8x24xf32>, vector<1x24xf32> -> vector<1x24xf32>
    %127 = vector.extract_strided_slice %2 {offsets = [6, 0], sizes = [1, 16], strides = [1, 1]} : vector<8x24xf32> to vector<1x16xf32>
    %128 = vector.extract_strided_slice %126 {offsets = [0, 0], sizes = [1, 16], strides = [1, 1]} : vector<1x24xf32> to vector<1x16xf32>
    %129 = arith.addf %127, %128 : vector<1x16xf32>
    %130 = arith.negf %129 : vector<1x16xf32>
    %131 = math.exp %130 : vector<1x16xf32>
    %cst_21 = arith.constant 1.000000e+00 : f32
    %132 = vector.broadcast %cst_21 : f32 to vector<1x16xf32>
    %133 = arith.addf %132, %131 : vector<1x16xf32>
    %134 = arith.divf %132, %133 : vector<1x16xf32>
    %135 = vector.extract_strided_slice %134 {offsets = [0, 0], sizes = [1, 8], strides = [1, 1]} : vector<1x16xf32> to vector<1x8xf32>
    %136 = vector.extract_strided_slice %134 {offsets = [0, 8], sizes = [1, 8], strides = [1, 1]} : vector<1x16xf32> to vector<1x8xf32>
    %137 = vector.extract_strided_slice %2 {offsets = [6, 16], sizes = [1, 8], strides = [1, 1]} : vector<8x24xf32> to vector<1x8xf32>
    %138 = vector.extract_strided_slice %126 {offsets = [0, 16], sizes = [1, 8], strides = [1, 1]} : vector<1x24xf32> to vector<1x8xf32>
    %139 = arith.addf %138, %4 : vector<1x8xf32>
    %140 = arith.mulf %135, %139 : vector<1x8xf32>
    %141 = arith.addf %137, %140 : vector<1x8xf32>
    %142 = math.tanh %141 : vector<1x8xf32>
    %143 = arith.subf %125, %142 : vector<1x8xf32>
    %144 = arith.mulf %136, %143 : vector<1x8xf32>
    %145 = arith.addf %142, %144 : vector<1x8xf32>
    %146 = tpu.concatenate %25, %45, %65, %85, %105, %125, %145 in 0 : vector<1x8xf32>, vector<1x8xf32>, vector<1x8xf32>, vector<1x8xf32>, vector<1x8xf32>, vector<1x8xf32>, vector<1x8xf32> -> vector<7x8xf32>
    %c2 = arith.constant 2 : index
    %c0_22 = arith.constant 0 : index
    %147 = vector.load %arg4[%c2, %c0_22] : memref<3x8xf32, #tpu.memory_space<vmem>>, vector<1x4xf32>
    %c0_23 = arith.constant 0 : index
    %c0_24 = arith.constant 0 : index
    %148 = vector.load %arg3[%c0_23, %c0_24] : memref<8x4xf32, #tpu.memory_space<vmem>>, vector<8x4xf32>
    %cst_25 = arith.constant dense<0.000000e+00> : vector<7x4xf32>
    %149 = tpu.matmul %146, %148, %cst_25 {dimension_numbers = #tpu.dot_dimension_numbers<[1], [0], [0], [1], [0, 0, 1, 1], [], []>} : vector<7x8xf32>, vector<8x4xf32>, vector<7x4xf32> -> vector<7x4xf32>
    %150 = vector.broadcast %147 : vector<1x4xf32> to vector<7x4xf32>
    %151 = arith.addf %149, %150 : vector<7x4xf32>
    %cst_26 = arith.constant 0.000000e+00 : f32
    %152 = vector.broadcast %cst_26 : f32 to vector<7x116xf32>
    %153 = tpu.concatenate %146, %151, %152 in 1 : vector<7x8xf32>, vector<7x4xf32>, vector<7x116xf32> -> vector<7x128xf32>
    %cst_27 = arith.constant 0.000000e+00 : f32
    %154 = vector.broadcast %cst_27 : f32 to vector<1x128xf32>
    %155 = tpu.concatenate %153, %154 in 0 : vector<7x128xf32>, vector<1x128xf32> -> vector<8x128xf32>
    %c0_28 = arith.constant 0 : index
    %c0_29 = arith.constant 0 : index
    %156 = vector.load %arg5[%c0_28, %c0_29] : memref<8x128xf32, #tpu.memory_space<vmem>>, vector<8x128xf32>
    tpu.vector_store %arg5[%c0_28, %c0_29], %155 {strides = array<i32>} : memref<8x128xf32, #tpu.memory_space<vmem>>, vector<8x128xf32>,
    return
  }
}

</mosaic_0001>

<llo_original>
// kernel: _gru_forward_impl.1
$region0: #{_gru_forward_impl.1}
  #allocation0 [shape = 'u32[]', space=smem, size = 0x4, offset = 0x4, fixed_abs, tag = 'smem constant byte address 0x4 - core index']
  #allocation1 [shape = 'u32[72,128]{1,0:T(1,128)}', space=vmem, size = 0x9000, scoped, tag = 'internal scratch']
  %s0 = inlined_call_operand.vmem [shape: f32[8,5], index: 0, kind: input, shape index: {}]
  %s1 = inlined_call_operand.vmem [shape: f32[5,24], index: 1, kind: input, shape index: {}]
  %s2 = inlined_call_operand.vmem [shape: f32[8,24], index: 2, kind: input, shape index: {}]
  %s3 = inlined_call_operand.vmem [shape: f32[8,4], index: 3, kind: input, shape index: {}]
  %s4 = inlined_call_operand.vmem [shape: f32[3,8], index: 4, kind: input, shape index: {}]
  %s5 = inlined_call_operand.vmem [shape: f32[8,128], index: 5, kind: output, shape index: {}]
  %s6 = sld [smem:[#allocation0]]
  $region30: #{_gru_forward_impl.1} parent=0
    _
  %s8 = ssub.s32 1, %s6
  %s9 = scalar_select 0, %s8, %s6
  // Predicated region
  $region2: #{_gru_forward_impl.1} parent=0 // pred_check
    _
  $region3: #{_gru_forward_impl.1} parent=0 // pred_check_branch
    %11 = sbr.rel (0) target = $region5
  $region4: #{_gru_forward_impl.1} parent=0 // pred_region
    _
  $region5: #{_gru_forward_impl.1} parent=0 // pred_fallthru
    _
  // Predicated region
  $region6: #{_gru_forward_impl.1} parent=0 // pred_check
    _
  $region7: #{_gru_forward_impl.1} parent=0 // pred_check_branch
    %13 = sbr.rel (0) target = $region9
  $region8: #{_gru_forward_impl.1} parent=0 // pred_region
    _
  $region9: #{_gru_forward_impl.1} parent=0 // pred_fallthru
    _
  // Predicated region
  $region10: #{_gru_forward_impl.1} parent=0 // pred_check
    _
  $region11: #{_gru_forward_impl.1} parent=0 // pred_check_branch
    %15 = sbr.rel (0) target = $region13
  $region12: #{_gru_forward_impl.1} parent=0 // pred_region
    _
  $region13: #{_gru_forward_impl.1} parent=0 // pred_fallthru
    _
  // Predicated region
  $region14: #{_gru_forward_impl.1} parent=0 // pred_check
    _
  $region15: #{_gru_forward_impl.1} parent=0 // pred_check_branch
    %17 = sbr.rel (0) target = $region17
  $region16: #{_gru_forward_impl.1} parent=0 // pred_region
    _
  $region17: #{_gru_forward_impl.1} parent=0 // pred_fallthru
    _
  // Predicated region
  $region18: #{_gru_forward_impl.1} parent=0 // pred_check
    _
  $region19: #{_gru_forward_impl.1} parent=0 // pred_check_branch
    %19 = sbr.rel (0) target = $region21
  $region20: #{_gru_forward_impl.1} parent=0 // pred_region
    _
  $region21: #{_gru_forward_impl.1} parent=0 // pred_fallthru
    _
  %v20 = vld [vmem:[%s0] sm:$0xff]
  %v21 = vld [vmem:[%s1] sm:$0x1f]
  %vm22 = vcmask 39936
  %v24 = vsel %vm22, %v20, 0
  %vm26 = vcmask 1044480
  %v28 = vsel %vm26, %v21, 0
  %30 = vmatpush.msra.mxu0 0.0
  %31 = vmatpush.msra.mxu0 0.0
  %32 = vmatpush.msra.mxu0 0.0
  %33 = vmatpush.msra.mxu0 0.0
  %34 = vmatpush.msra.mxu0 0.0
  %35 = vmatpush.msra.mxu0 0.0
  %36 = vmatpush.msra.mxu0 0.0
  %37 = vmatpush.msra.mxu0 0.0
  %38 = vmatpush.msra.mxu0 0.0
  %39 = vmatpush.msra.mxu0 0.0
  %40 = vmatpush.msra.mxu0 0.0
  %41 = vmatpush.msra.mxu0 0.0
  %42 = vmatpush.msra.mxu0 0.0
  %43 = vmatpush.msra.mxu0 0.0
  %44 = vmatpush.msra.mxu0 0.0
  %45 = vmatpush.msra.mxu0 %v28
  %46 = vmatmul.f32.gmra.mxu0 %v24
  %v47 = vpop.f32.mrf.mxu0
  %v48 = vadd.f32 0.0, %v47
  %49 = vdwg.mxu0
  %v50 = vld [vmem:[%s2] sm:$0xff]
  %v51 = vld [vmem:[%s4] sm:$0x1]
  %v52 = vld [vmem:[%s4 + $0x1] sm:$0x1]
  %vm53 = vcmask 64512
  %v55 = vsel %vm53, %v52, 0
  %57 = vmatpush.msra.mxu0 0.0
  %58 = vmatpush.msra.mxu0 0.0
  %59 = vmatpush.msra.mxu0 0.0
  %60 = vmatpush.msra.mxu0 0.0
  %61 = vmatpush.msra.mxu0 0.0
  %62 = vmatpush.msra.mxu0 0.0
  %63 = vmatpush.msra.mxu0 0.0
  %64 = vmatpush.msra.mxu0 0.0
  %65 = vmatpush.msra.mxu0 0.0
  %66 = vmatpush.msra.mxu0 0.0
  %67 = vmatpush.msra.mxu0 0.0
  %68 = vmatpush.msra.mxu0 0.0
  %69 = vmatpush.msra.mxu0 0.0
  %70 = vmatpush.msra.mxu0 0.0
  %71 = vmatpush.msra.mxu0 0.0
  %72 = vmatpush.msra.mxu0 %v50
  %73 = vmatmul.f32.gmra.mxu0 %v55
  %v74 = vpop.f32.mrf.mxu0
  %v75 = vadd.f32 0.0, %v74
  %76 = vdwg.mxu0
  %v77 = vadd.f32 %v48, %v75
  %v78 = vxor.u32 %v77, 2147483648
  %v79 = vmul.f32 %v78, 1.442695
  %v80 = vpow.pop %v79
  %v81 = vadd.f32 %v80, 1.0
  %v82 = vrcp.pop %v81
  %v83 = vmul.f32 %v81, %v82
  %v84 = vsub.f32 1.0, %v83
  %v85 = vmul.f32 %v82, %v84
  %v86 = vadd.f32 %v82, %v85
  %vm87 = vweird.f32 %v81
  %vm88 = vweird.f32 %v82
  %vm89 = vmor %vm87, %vm88
  %v90 = vsel %vm89, %v82, %v86
  %v91 = vand.u32 2147483647, %v81
  %vm92 = vcmp.eq.f32.partialorder %v91, 8.507059e+37
  %v93 = vand.u32 %v81, 2147483648
  %v94 = vor.u32 1.1754944e-38, %v93
  %v95 = vsel %vm92, %v94, %v90
  %v96 = vmul.f32 1.0, %v95
  %98 = vrot.lane.b32.xlu0 %v51, 16
  %v99 = vpop.permute.xlu0 %98
  %v101 = vadd.f32 %v75, %v99
  %103 = vrot.lane.b32.xlu0 %v101, 112
  %v104 = vpop.permute.xlu0 %103
  %v106 = vmul.f32 %v96, %v104
  %108 = vrot.lane.b32.xlu0 %v106, 16
  %v109 = vpop.permute.xlu0 %108
  %v111 = vadd.f32 %v48, %v109
  %v112 = vtanh.pop %v111
  %114 = vrot.lane.b32.xlu0 %v112, 112
  %v115 = vpop.permute.xlu0 %114
  %v117 = vsub.f32 %v52, %v115
  %119 = vrot.lane.b32.xlu0 %v117, 8
  %v120 = vpop.permute.xlu0 %119
  %v122 = vmul.f32 %v96, %v120
  %124 = vrot.lane.b32.xlu0 %v122, 8
  %v125 = vpop.permute.xlu0 %124
  %v127 = vadd.f32 %v112, %v125
  %129 = vrot.lane.b32.xlu0 %v127, 112
  %v130 = vpop.permute.xlu0 %129
  %v131 = vsel %vm53, %v130, 0
  %133 = vmatpush.msra.mxu0 0.0
  %134 = vmatpush.msra.mxu0 0.0
  %135 = vmatpush.msra.mxu0 0.0
  %136 = vmatpush.msra.mxu0 0.0
  %137 = vmatpush.msra.mxu0 0.0
  %138 = vmatpush.msra.mxu0 0.0
  %139 = vmatpush.msra.mxu0 0.0
  %140 = vmatpush.msra.mxu0 0.0
  %141 = vmatpush.msra.mxu0 0.0
  %142 = vmatpush.msra.mxu0 0.0
  %143 = vmatpush.msra.mxu0 0.0
  %144 = vmatpush.msra.mxu0 0.0
  %145 = vmatpush.msra.mxu0 0.0
  %146 = vmatpush.msra.mxu0 0.0
  %147 = vmatpush.msra.mxu0 0.0
  %148 = vmatpush.msra.mxu0 %v50
  %149 = vmatmul.f32.gmra.mxu0 %v131
  %v150 = vpop.f32.mrf.mxu0
  %v151 = vadd.f32 0.0, %v150
  %152 = vdwg.mxu0
  %v154 = vrot.slane %v151, 7
  %v156 = vadd.f32 %v48, %v154
  %v157 = vxor.u32 %v156, 2147483648
  %v158 = vmul.f32 %v157, 1.442695
  %v159 = vpow.pop %v158
  %v160 = vadd.f32 %v159, 1.0
  %v161 = vrcp.pop %v160
  %v162 = vmul.f32 %v160, %v161
  %v163 = vsub.f32 1.0, %v162
  %v164 = vmul.f32 %v161, %v163
  %v165 = vadd.f32 %v161, %v164
  %vm166 = vweird.f32 %v160
  %vm167 = vweird.f32 %v161
  %vm168 = vmor %vm166, %vm167
  %v169 = vsel %vm168, %v161, %v165
  %v170 = vand.u32 2147483647, %v160
  %vm171 = vcmp.eq.f32.partialorder %v170, 8.507059e+37
  %v172 = vand.u32 %v160, 2147483648
  %v173 = vor.u32 1.1754944e-38, %v172
  %v174 = vsel %vm171, %v173, %v169
  %v175 = vmul.f32 1.0, %v174
  %v176 = vadd.f32 %v151, %v99
  %v178 = vrot.slane %v176, 7
  %179 = vrot.lane.b32.xlu0 %v178, 112
  %v180 = vpop.permute.xlu0 %179
  %v182 = vmul.f32 %v175, %v180
  %184 = vrot.lane.b32.xlu0 %v182, 16
  %v185 = vpop.permute.xlu0 %184
  %v187 = vadd.f32 %v48, %v185
  %v188 = vtanh.pop %v187
  %v190 = vrot.slane %v188, 1
  %v192 = vsub.f32 %v127, %v190
  %v194 = vrot.slane %v192, 7
  %195 = vrot.lane.b32.xlu0 %v194, 120
  %v196 = vpop.permute.xlu0 %195
  %v198 = vmul.f32 %v175, %v196
  %200 = vrot.lane.b32.xlu0 %v198, 8
  %v201 = vpop.permute.xlu0 %200
  %v203 = vadd.f32 %v188, %v201
  %v205 = vrot.slane %v203, 1
  %206 = vrot.lane.b32.xlu0 %v205, 112
  %v207 = vpop.permute.xlu0 %206
  %v208 = vsel %vm53, %v207, 0
  %210 = vmatpush.msra.mxu0 0.0
  %211 = vmatpush.msra.mxu0 0.0
  %212 = vmatpush.msra.mxu0 0.0
  %213 = vmatpush.msra.mxu0 0.0
  %214 = vmatpush.msra.mxu0 0.0
  %215 = vmatpush.msra.mxu0 0.0
  %216 = vmatpush.msra.mxu0 0.0
  %217 = vmatpush.msra.mxu0 0.0
  %218 = vmatpush.msra.mxu0 0.0
  %219 = vmatpush.msra.mxu0 0.0
  %220 = vmatpush.msra.mxu0 0.0
  %221 = vmatpush.msra.mxu0 0.0
  %222 = vmatpush.msra.mxu0 0.0
  %223 = vmatpush.msra.mxu0 0.0
  %224 = vmatpush.msra.mxu0 0.0
  %225 = vmatpush.msra.mxu0 %v50
  %226 = vmatmul.f32.gmra.mxu0 %v208
  %v227 = vpop.f32.mrf.mxu0
  %v228 = vadd.f32 0.0, %v227
  %229 = vdwg.mxu0
  %v231 = vrot.slane %v228, 6
  %v233 = vadd.f32 %v48, %v231
  %v234 = vxor.u32 %v233, 2147483648
  %v235 = vmul.f32 %v234, 1.442695
  %v236 = vpow.pop %v235
  %v237 = vadd.f32 %v236, 1.0
  %v238 = vrcp.pop %v237
  %v239 = vmul.f32 %v237, %v238
  %v240 = vsub.f32 1.0, %v239
  %v241 = vmul.f32 %v238, %v240
  %v242 = vadd.f32 %v238, %v241
  %vm243 = vweird.f32 %v237
  %vm244 = vweird.f32 %v238
  %vm245 = vmor %vm243, %vm244
  %v246 = vsel %vm245, %v238, %v242
  %v247 = vand.u32 2147483647, %v237
  %vm248 = vcmp.eq.f32.partialorder %v247, 8.507059e+37
  %v249 = vand.u32 %v237, 2147483648
  %v250 = vor.u32 1.1754944e-38, %v249
  %v251 = vsel %vm248, %v250, %v246
  %v252 = vmul.f32 1.0, %v251
  %v253 = vadd.f32 %v228, %v99
  %v255 = vrot.slane %v253, 6
  %256 = vrot.lane.b32.xlu0 %v255, 112
  %v257 = vpop.permute.xlu0 %256
  %v259 = vmul.f32 %v252, %v257
  %261 = vrot.lane.b32.xlu0 %v259, 16
  %v262 = vpop.permute.xlu0 %261
  %v264 = vadd.f32 %v48, %v262
  %v265 = vtanh.pop %v264
  %v267 = vrot.slane %v265, 1
  %v269 = vsub.f32 %v203, %v267
  %v271 = vrot.slane %v269, 7
  %272 = vrot.lane.b32.xlu0 %v271, 120
  %v273 = vpop.permute.xlu0 %272
  %v275 = vmul.f32 %v252, %v273
  %277 = vrot.lane.b32.xlu0 %v275, 8
  %v278 = vpop.permute.xlu0 %277
  %v280 = vadd.f32 %v265, %v278
  %v282 = vrot.slane %v280, 2
  %283 = vrot.lane.b32.xlu0 %v282, 112
  %v284 = vpop.permute.xlu0 %283
  %v285 = vsel %vm53, %v284, 0
  %287 = vmatpush.msra.mxu0 0.0
  %288 = vmatpush.msra.mxu0 0.0
  %289 = vmatpush.msra.mxu0 0.0
  %290 = vmatpush.msra.mxu0 0.0
  %291 = vmatpush.msra.mxu0 0.0
  %292 = vmatpush.msra.mxu0 0.0
  %293 = vmatpush.msra.mxu0 0.0
  %294 = vmatpush.msra.mxu0 0.0
  %295 = vmatpush.msra.mxu0 0.0
  %296 = vmatpush.msra.mxu0 0.0
  %297 = vmatpush.msra.mxu0 0.0
  %298 = vmatpush.msra.mxu0 0.0
  %299 = vmatpush.msra.mxu0 0.0
  %300 = vmatpush.msra.mxu0 0.0
  %301 = vmatpush.msra.mxu0 0.0
  %302 = vmatpush.msra.mxu0 %v50
  %303 = vmatmul.f32.gmra.mxu0 %v285
  %v304 = vpop.f32.mrf.mxu0
  %v305 = vadd.f32 0.0, %v304
  %306 = vdwg.mxu0
  %v308 = vrot.slane %v305, 5
  %v310 = vadd.f32 %v48, %v308
  %v311 = vxor.u32 %v310, 2147483648
  %v312 = vmul.f32 %v311, 1.442695
  %v313 = vpow.pop %v312
  %v314 = vadd.f32 %v313, 1.0
  %v315 = vrcp.pop %v314
  %v316 = vmul.f32 %v314, %v315
  %v317 = vsub.f32 1.0, %v316
  %v318 = vmul.f32 %v315, %v317
  %v319 = vadd.f32 %v315, %v318
  %vm320 = vweird.f32 %v314
  %vm321 = vweird.f32 %v315
  %vm322 = vmor %vm320, %vm321
  %v323 = vsel %vm322, %v315, %v319
  %v324 = vand.u32 2147483647, %v314
  %vm325 = vcmp.eq.f32.partialorder %v324, 8.507059e+37
  %v326 = vand.u32 %v314, 2147483648
  %v327 = vor.u32 1.1754944e-38, %v326
  %v328 = vsel %vm325, %v327, %v323
  %v329 = vmul.f32 1.0, %v328
  %v330 = vadd.f32 %v305, %v99
  %v332 = vrot.slane %v330, 5
  %333 = vrot.lane.b32.xlu0 %v332, 112
  %v334 = vpop.permute.xlu0 %333
  %v336 = vmul.f32 %v329, %v334
  %338 = vrot.lane.b32.xlu0 %v336, 16
  %v339 = vpop.permute.xlu0 %338
  %v341 = vadd.f32 %v48, %v339
  %v342 = vtanh.pop %v341
  %v344 = vrot.slane %v342, 1
  %v346 = vsub.f32 %v280, %v344
  %v348 = vrot.slane %v346, 7
  %349 = vrot.lane.b32.xlu0 %v348, 120
  %v350 = vpop.permute.xlu0 %349
  %v352 = vmul.f32 %v329, %v350
  %354 = vrot.lane.b32.xlu0 %v352, 8
  %v355 = vpop.permute.xlu0 %354
  %v357 = vadd.f32 %v342, %v355
  %v359 = vrot.slane %v357, 3
  %360 = vrot.lane.b32.xlu0 %v359, 112
  %v361 = vpop.permute.xlu0 %360
  %v362 = vsel %vm53, %v361, 0
  %364 = vmatpush.msra.mxu0 0.0
  %365 = vmatpush.msra.mxu0 0.0
  %366 = vmatpush.msra.mxu0 0.0
  %367 = vmatpush.msra.mxu0 0.0
  %368 = vmatpush.msra.mxu0 0.0
  %369 = vmatpush.msra.mxu0 0.0
  %370 = vmatpush.msra.mxu0 0.0
  %371 = vmatpush.msra.mxu0 0.0
  %372 = vmatpush.msra.mxu0 0.0
  %373 = vmatpush.msra.mxu0 0.0
  %374 = vmatpush.msra.mxu0 0.0
  %375 = vmatpush.msra.mxu0 0.0
  %376 = vmatpush.msra.mxu0 0.0
  %377 = vmatpush.msra.mxu0 0.0
  %378 = vmatpush.msra.mxu0 0.0
  %379 = vmatpush.msra.mxu0 %v50
  %380 = vmatmul.f32.gmra.mxu0 %v362
  %v381 = vpop.f32.mrf.mxu0
  %v382 = vadd.f32 0.0, %v381
  %383 = vdwg.mxu0
  %v385 = vrot.slane %v382, 4
  %v387 = vadd.f32 %v48, %v385
  %v388 = vxor.u32 %v387, 2147483648
  %v389 = vmul.f32 %v388, 1.442695
  %v390 = vpow.pop %v389
  %v391 = vadd.f32 %v390, 1.0
  %v392 = vrcp.pop %v391
  %v393 = vmul.f32 %v391, %v392
  %v394 = vsub.f32 1.0, %v393
  %v395 = vmul.f32 %v392, %v394
  %v396 = vadd.f32 %v392, %v395
  %vm397 = vweird.f32 %v391
  %vm398 = vweird.f32 %v392
  %vm399 = vmor %vm397, %vm398
  %v400 = vsel %vm399, %v392, %v396
  %v401 = vand.u32 2147483647, %v391
  %vm402 = vcmp.eq.f32.partialorder %v401, 8.507059e+37
  %v403 = vand.u32 %v391, 2147483648
  %v404 = vor.u32 1.1754944e-38, %v403
  %v405 = vsel %vm402, %v404, %v400
  %v406 = vmul.f32 1.0, %v405
  %v407 = vadd.f32 %v382, %v99
  %v409 = vrot.slane %v407, 4
  %410 = vrot.lane.b32.xlu0 %v409, 112
  %v411 = vpop.permute.xlu0 %410
  %v413 = vmul.f32 %v406, %v411
  %415 = vrot.lane.b32.xlu0 %v413, 16
  %v416 = vpop.permute.xlu0 %415
  %v418 = vadd.f32 %v48, %v416
  %v419 = vtanh.pop %v418
  %v421 = vrot.slane %v419, 1
  %v423 = vsub.f32 %v357, %v421
  %v425 = vrot.slane %v423, 7
  %426 = vrot.lane.b32.xlu0 %v425, 120
  %v427 = vpop.permute.xlu0 %426
  %v429 = vmul.f32 %v406, %v427
  %431 = vrot.lane.b32.xlu0 %v429, 8
  %v432 = vpop.permute.xlu0 %431
  %v434 = vadd.f32 %v419, %v432
  %v436 = vrot.slane %v434, 4
  %437 = vrot.lane.b32.xlu0 %v436, 112
  %v438 = vpop.permute.xlu0 %437
  %v439 = vsel %vm53, %v438, 0
  %441 = vmatpush.msra.mxu0 0.0
  %442 = vmatpush.msra.mxu0 0.0
  %443 = vmatpush.msra.mxu0 0.0
  %444 = vmatpush.msra.mxu0 0.0
  %445 = vmatpush.msra.mxu0 0.0
  %446 = vmatpush.msra.mxu0 0.0
  %447 = vmatpush.msra.mxu0 0.0
  %448 = vmatpush.msra.mxu0 0.0
  %449 = vmatpush.msra.mxu0 0.0
  %450 = vmatpush.msra.mxu0 0.0
  %451 = vmatpush.msra.mxu0 0.0
  %452 = vmatpush.msra.mxu0 0.0
  %453 = vmatpush.msra.mxu0 0.0
  %454 = vmatpush.msra.mxu0 0.0
  %455 = vmatpush.msra.mxu0 0.0
  %456 = vmatpush.msra.mxu0 %v50
  %457 = vmatmul.f32.gmra.mxu0 %v439
  %v458 = vpop.f32.mrf.mxu0
  %v459 = vadd.f32 0.0, %v458
  %460 = vdwg.mxu0
  %v462 = vrot.slane %v459, 3
  %v464 = vadd.f32 %v48, %v462
  %v465 = vxor.u32 %v464, 2147483648
  %v466 = vmul.f32 %v465, 1.442695
  %v467 = vpow.pop %v466
  %v468 = vadd.f32 %v467, 1.0
  %v469 = vrcp.pop %v468
  %v470 = vmul.f32 %v468, %v469
  %v471 = vsub.f32 1.0, %v470
  %v472 = vmul.f32 %v469, %v471
  %v473 = vadd.f32 %v469, %v472
  %vm474 = vweird.f32 %v468
  %vm475 = vweird.f32 %v469
  %vm476 = vmor %vm474, %vm475
  %v477 = vsel %vm476, %v469, %v473
  %v478 = vand.u32 2147483647, %v468
  %vm479 = vcmp.eq.f32.partialorder %v478, 8.507059e+37
  %v480 = vand.u32 %v468, 2147483648
  %v481 = vor.u32 1.1754944e-38, %v480
  %v482 = vsel %vm479, %v481, %v477
  %v483 = vmul.f32 1.0, %v482
  %v484 = vadd.f32 %v459, %v99
  %v486 = vrot.slane %v484, 3
  %487 = vrot.lane.b32.xlu0 %v486, 112
  %v488 = vpop.permute.xlu0 %487
  %v490 = vmul.f32 %v483, %v488
  %492 = vrot.lane.b32.xlu0 %v490, 16
  %v493 = vpop.permute.xlu0 %492
  %v495 = vadd.f32 %v48, %v493
  %v496 = vtanh.pop %v495
  %v498 = vrot.slane %v496, 1
  %v500 = vsub.f32 %v434, %v498
  %v502 = vrot.slane %v500, 7
  %503 = vrot.lane.b32.xlu0 %v502, 120
  %v504 = vpop.permute.xlu0 %503
  %v506 = vmul.f32 %v483, %v504
  %508 = vrot.lane.b32.xlu0 %v506, 8
  %v509 = vpop.permute.xlu0 %508
  %v511 = vadd.f32 %v496, %v509
  %v513 = vrot.slane %v511, 5
  %514 = vrot.lane.b32.xlu0 %v513, 112
  %v515 = vpop.permute.xlu0 %514
  %v516 = vsel %vm53, %v515, 0
  %518 = vmatpush.msra.mxu0 0.0
  %519 = vmatpush.msra.mxu0 0.0
  %520 = vmatpush.msra.mxu0 0.0
  %521 = vmatpush.msra.mxu0 0.0
  %522 = vmatpush.msra.mxu0 0.0
  %523 = vmatpush.msra.mxu0 0.0
  %524 = vmatpush.msra.mxu0 0.0
  %525 = vmatpush.msra.mxu0 0.0
  %526 = vmatpush.msra.mxu0 0.0
  %527 = vmatpush.msra.mxu0 0.0
  %528 = vmatpush.msra.mxu0 0.0
  %529 = vmatpush.msra.mxu0 0.0
  %530 = vmatpush.msra.mxu0 0.0
  %531 = vmatpush.msra.mxu0 0.0
  %532 = vmatpush.msra.mxu0 0.0
  %533 = vmatpush.msra.mxu0 %v50
  %534 = vmatmul.f32.gmra.mxu0 %v516
  %v535 = vpop.f32.mrf.mxu0
  %v536 = vadd.f32 0.0, %v535
  %537 = vdwg.mxu0
  %v539 = vrot.slane %v536, 2
  %v541 = vadd.f32 %v48, %v539
  %v542 = vxor.u32 %v541, 2147483648
  %v543 = vmul.f32 %v542, 1.442695
  %v544 = vpow.pop %v543
  %v545 = vadd.f32 %v544, 1.0
  %v546 = vrcp.pop %v545
  %v547 = vmul.f32 %v545, %v546
  %v548 = vsub.f32 1.0, %v547
  %v549 = vmul.f32 %v546, %v548
  %v550 = vadd.f32 %v546, %v549
  %vm551 = vweird.f32 %v545
  %vm552 = vweird.f32 %v546
  %vm553 = vmor %vm551, %vm552
  %v554 = vsel %vm553, %v546, %v550
  %v555 = vand.u32 2147483647, %v545
  %vm556 = vcmp.eq.f32.partialorder %v555, 8.507059e+37
  %v557 = vand.u32 %v545, 2147483648
  %v558 = vor.u32 1.1754944e-38, %v557
  %v559 = vsel %vm556, %v558, %v554
  %v560 = vmul.f32 1.0, %v559
  %v561 = vadd.f32 %v536, %v99
  %v563 = vrot.slane %v561, 2
  %564 = vrot.lane.b32.xlu0 %v563, 112
  %v565 = vpop.permute.xlu0 %564
  %v567 = vmul.f32 %v560, %v565
  %569 = vrot.lane.b32.xlu0 %v567, 16
  %v570 = vpop.permute.xlu0 %569
  %v572 = vadd.f32 %v48, %v570
  %v573 = vtanh.pop %v572
  %v575 = vrot.slane %v573, 1
  %v577 = vsub.f32 %v511, %v575
  %v579 = vrot.slane %v577, 7
  %580 = vrot.lane.b32.xlu0 %v579, 120
  %v581 = vpop.permute.xlu0 %580
  %v583 = vmul.f32 %v560, %v581
  %585 = vrot.lane.b32.xlu0 %v583, 8
  %v586 = vpop.permute.xlu0 %585
  %v588 = vadd.f32 %v573, %v586
  %vm589 = vcmask 1040384
  %v590 = vsel %vm589, %v127, %v203
  %vm591 = vcmask 1041408
  %v592 = vsel %vm591, %v590, %v280
  %vm593 = vcmask 1042432
  %v594 = vsel %vm593, %v592, %v357
  %vm595 = vcmask 1043456
  %v596 = vsel %vm595, %v594, %v434
  %v597 = vsel %vm26, %v596, %v511
  %vm598 = vcmask 1045504
  %v599 = vsel %vm598, %v597, %v588
  %v600 = vld [vmem:[%s4 + $0x2] sm:$0x1]
  %v601 = vld [vmem:[%s3] sm:$0xff]
  %v602 = vperm.slane %v600, 0
  %604 = vrot.lane.b32.xlu0 %v599, 112
  %v605 = vpop.permute.xlu0 %604
  %v606 = vsel %vm53, %v605, 0
  %608 = vmatpush.msra.mxu0 0.0
  %609 = vmatpush.msra.mxu0 0.0
  %610 = vmatpush.msra.mxu0 0.0
  %611 = vmatpush.msra.mxu0 0.0
  %612 = vmatpush.msra.mxu0 0.0
  %613 = vmatpush.msra.mxu0 0.0
  %614 = vmatpush.msra.mxu0 0.0
  %615 = vmatpush.msra.mxu0 0.0
  %616 = vmatpush.msra.mxu0 0.0
  %617 = vmatpush.msra.mxu0 0.0
  %618 = vmatpush.msra.mxu0 0.0
  %619 = vmatpush.msra.mxu0 0.0
  %620 = vmatpush.msra.mxu0 0.0
  %621 = vmatpush.msra.mxu0 0.0
  %622 = vmatpush.msra.mxu0 0.0
  %623 = vmatpush.msra.mxu0 %v601
  %624 = vmatmul.f32.gmra.mxu0 %v606
  %v625 = vpop.f32.mrf.mxu0
  %v626 = vadd.f32 %v602, %v625
  %627 = vdwg.mxu0
  %630 = vrot.lane.b32.xlu0 %v626, 8
  %v631 = vpop.permute.xlu0 %630
  %v633 = vsel %vm53, %v605, %v631
  %vm634 = vcmask 97280
  %v635 = vsel %vm634, %v633, 0.0
  %vm636 = vcmask 1046528
  %v637 = vsel %vm636, %v635, 0.0
  %638 = vst [vmem:[%s5] sm:$0xff] %v637
  // Predicated region
  $region22: #{_gru_forward_impl.1} parent=0 // pred_check
    _
  $region23: #{_gru_forward_impl.1} parent=0 // pred_check_branch
    %640 = sbr.rel (0) target = $region25
  $region24: #{_gru_forward_impl.1} parent=0 // pred_region
    _
  $region25: #{_gru_forward_impl.1} parent=0 // pred_fallthru
    _
  // Predicated region
  $region26: #{_gru_forward_impl.1} parent=0 // pred_check
    _
  $region27: #{_gru_forward_impl.1} parent=0 // pred_check_branch
    %642 = sbr.rel (0) target = $region29
  $region28: #{_gru_forward_impl.1} parent=0 // pred_region
    _
  $region29: #{_gru_forward_impl.1} parent=0 // pred_fallthru
    _

</llo_original>
